<compile_context>
chip_gen: v7x
topology: tpu7x:2x2x1
jax: 0.10.0
libtpu: 0.0.40
codegen_flags: <defaults>
</compile_context>

<pallas_src>
import functools

import jax
import jax.numpy as jnp
from jax.experimental import pallas as pl
from jax.experimental.pallas import tpu as pltpu


_LANE_CANDIDATES = (2048, 1024, 512, 256, 128)
_MIN_STEPS = 8                 # target pipeline depth for non-tiny inputs
_RAGGED_LANE_CAP = 64 * 1024   # cap single-sublane ragged blocks conservatively


def _tpu_generation():
    """Best-effort TPU generation (5 / 6 / 7); 0 if unknown."""
    try:
        kind = jax.devices()[0].device_kind.lower()
    except Exception:
        return 0
    if "7" in kind:
        return 7
    if "v6" in kind or "trillium" in kind:
        return 6
    if "v5" in kind:
        return 5
    return 0


def _matriach_kernel(x_ref, o_ref, *, alpha, beta, theta, meta):
    # I/O in caller dtype; compute in f32 on the VPU/EUP.
    x = x_ref[...].astype(jnp.float32)
    nx = -x

    def _exp(coef):
        return jnp.exp(nx if coef == 1.0 else nx * coef)

    def _ipow(base, k):  # base**k with VPU multiplies (small integer k >= 2)
        r = base
        for _ in range(k - 1):
            r = r * base
        return r

    # EUP economy: share / derive the two exp(-x*c) terms when possible.
    if meta == beta:
        e_beta = _exp(beta)
        e_meta = e_beta
    elif beta != 0.0 and (meta / beta) in (2.0, 3.0, 4.0):
        e_beta = _exp(beta)
        e_meta = _ipow(e_beta, int(meta / beta))
    elif meta != 0.0 and (beta / meta) in (2.0, 3.0, 4.0):
        e_meta = _exp(meta)
        e_beta = _ipow(e_meta, int(beta / meta))
    else:
        e_beta = _exp(beta)
        e_meta = _exp(meta)

    logterm = jnp.log(2.0 - jnp.exp(-e_meta))
    denom = theta + e_beta * logterm              # theta * 1 == theta
    num = x if alpha == 1.0 else x * alpha
    # Exact f32 divide on purpose: approx reciprocal + one Newton step would
    # turn denom == +inf (x*beta << 0) into NaN (inf * 0) instead of matching
    # the f32 reference's 0; exact divide keeps 1e-5 parity everywhere.
    o_ref[...] = (num / denom).astype(o_ref.dtype)


def matriach(x, alpha=1.0, beta=1.0, theta=1.0, meta=1.0):
    """Elementwise Matriach activation. Any shape; returns same shape/dtype."""
    orig_shape = x.shape
    orig_dtype = x.dtype
    n = x.size
    if n == 0:
        return x

    itemsize = jnp.dtype(orig_dtype).itemsize
    gen = _tpu_generation()
    # 2 MiB blocks on v5e/unknown (16 MiB scoped VMEM default),
    # 4 MiB on v6e/v7x (32 MiB scoped default; 2 arrays x 2 buffers = 16 MiB).
    tgt_bytes = (4 if gen >= 6 else 2) * 1024 * 1024

    x_flat = jnp.reshape(x, (-1,))  # metadata-only for contiguous inputs

    if n % 128 == 0:
        # Lane-dense 2-D slab; grid over rows.  The last row block may be
        # partial — Pallas clips it, so no wrapper-side padding is needed.
        lane = next(L for L in _LANE_CANDIDATES if n % L == 0)
        rows = n // lane
        arr = jnp.reshape(x_flat, (rows, lane))
        if rows <= 8:
            rb = rows                              # full-extent tiny block
        else:
            cap_rows = max(8, (tgt_bytes // (lane * itemsize)) // 8 * 8)
            rb = min(cap_rows, max(8, -(-rows // _MIN_STEPS)))
            rb = max(8, (rb // 8) * 8)
            if gen >= 7:
                # Prefer an even number of grid steps so both TensorCores get
                # equal work when the "parallel" axis shards across them.
                steps = -(-rows // rb)
                if 1 < steps <= 16 and steps % 2 == 1 and rb > 8:
                    rb_alt = rb - 8
                    if (-(-rows // rb_alt)) % 2 == 0:
                        rb = rb_alt
        grid = (pl.cdiv(rows, rb),)
        block = (rb, lane)
        index_map = lambda i: (i, 0)
    else:
        # Ragged element count: (1, n) slab, grid over the lane axis with a
        # clipped (masked) final block — avoids the pad + [:n] slice HBM passes.
        # TODO(synk): if Mosaic lays this out one-sublane-wide the EUP work is
        # underpacked; acceptable for the rare ragged path.
        arr = jnp.reshape(x_flat, (1, n))
        if n < 128:
            be = n                                 # full-extent block
        else:
            cap = (min(tgt_bytes // itemsize, _RAGGED_LANE_CAP) // 128) * 128
            be = min(cap, ((-(-n // _MIN_STEPS)) + 127) // 128 * 128)
            be = max(128, be)
        grid = (pl.cdiv(n, be),)
        block = (1, be)
        index_map = lambda i: (0, i)

    kernel = functools.partial(
        _matriach_kernel,
        alpha=float(alpha), beta=float(beta), theta=float(theta), meta=float(meta),
    )

    out = pl.pallas_call(
        kernel,
        out_shape=jax.ShapeDtypeStruct(arr.shape, orig_dtype),
        grid_spec=pltpu.PrefetchScalarGridSpec(
            num_scalar_prefetch=0,
            grid=grid,
            in_specs=[pl.BlockSpec(block, index_map)],
            out_specs=pl.BlockSpec(block, index_map),
        ),
        compiler_params=pltpu.CompilerParams(
            dimension_semantics=("parallel",),
            vmem_limit_bytes=(32 * 1024 * 1024 if gen >= 6 else None),
        ),
        cost_estimate=pl.CostEstimate(
            flops=8 * n,
            transcendentals=4 * n,
            bytes_accessed=2 * n * itemsize,
        ),
    )(arr)

    return jnp.reshape(out, orig_shape)


def _matriach_ref(x, alpha=1.0, beta=1.0, theta=1.0, meta=1.0):
    return x * alpha * (
        1.0
        / (theta * 1.0
           + jnp.exp(-x * beta) * jnp.log(2.0 - jnp.exp(-jnp.exp(-x * meta))))
    )


if __name__ == "__main__":
    key = jax.random.PRNGKey(0)

    # --- primary check: small NCHW f32 input (aligned 2-D slab path) ---
    x = jax.random.normal(key, (2, 4, 16, 16), dtype=jnp.float32)
    y = jax.block_until_ready(matriach(x))
    y_ref = _matriach_ref(x)
    assert y.shape == x.shape and y.dtype == x.dtype
    assert jnp.allclose(y, y_ref, atol=1e-5, rtol=1e-5), "f32 aligned mismatch"

    # --- non-default parameters (exercises the derived-exp EUP branch) ---
    params = dict(alpha=0.5, beta=1.0, theta=1.5, meta=2.0)
    y2 = jax.block_until_ready(matriach(x, **params))
    assert jnp.allclose(y2, _matriach_ref(x, **params), atol=1e-5, rtol=1e-5), \
        "param-variant mismatch"

    # --- ragged element count (in-kernel clipped final block; no pad/slice) ---
    xr = jax.random.normal(jax.random.PRNGKey(1), (7, 11, 13, 101),
                           dtype=jnp.float32)
    yr = jax.block_until_ready(matriach(xr))
    assert yr.shape == xr.shape and yr.dtype == xr.dtype
    assert jnp.allclose(yr, _matriach_ref(xr), atol=1e-5, rtol=1e-5), \
        "ragged mismatch"

    # --- bf16 I/O parity (f32 compute inside the kernel) ---
    xb = x.astype(jnp.bfloat16)
    yb = jax.block_until_ready(matriach(xb))
    yb_ref = _matriach_ref(xb.astype(jnp.float32)).astype(jnp.bfloat16)
    assert yb.dtype == jnp.bfloat16
    assert jnp.allclose(yb.astype(jnp.float32), yb_ref.astype(jnp.float32),
                        atol=2e-2, rtol=2e-2), "bf16 mismatch"

    print("KERNEL_OK")
</pallas_src>

<mosaic_0001>
module attributes {stable_mosaic.version = 11 : i64} {
  func.func @_matriach_kernel(%arg0: i32, %arg1: memref<1x2048xf32, #tpu.memory_space<vmem>>, %arg2: memref<1x2048xf32, #tpu.memory_space<vmem>>) attributes {dimension_semantics = [#tpu.dimension_semantics<parallel>], iteration_bounds = array<i64: 1>, scalar_prefetch = 0 : i64, scratch_operands = 0 : i64, tpu.core_type = #tpu.core_type<tc>, window_params = [{transform_indices = @transform_0, window_bounds = array<i64: 1, 2048>}, {transform_indices = @transform_1, window_bounds = array<i64: 1, 2048>}]} {
    %c0 = arith.constant 0 : index
    %c0_0 = arith.constant 0 : index
    %0 = vector.load %arg1[%c0, %c0_0] : memref<1x2048xf32, #tpu.memory_space<vmem>>, vector<1x2048xf32>
    %cst = arith.constant 0.000000e+00 : f32
    %1 = vector.broadcast %cst : f32 to vector<1x2048xf32>
    %2 = arith.subf %1, %0 : vector<1x2048xf32>
    %3 = math.exp %2 : vector<1x2048xf32>
    %cst_1 = arith.constant 0.000000e+00 : f32
    %4 = vector.broadcast %cst_1 : f32 to vector<1x2048xf32>
    %5 = arith.subf %4, %3 : vector<1x2048xf32>
    %6 = math.exp %5 : vector<1x2048xf32>
    %cst_2 = arith.constant 2.000000e+00 : f32
    %7 = vector.broadcast %cst_2 : f32 to vector<1x2048xf32>
    %8 = arith.subf %7, %6 : vector<1x2048xf32>
    %9 = math.log %8 : vector<1x2048xf32>
    %10 = arith.mulf %3, %9 : vector<1x2048xf32>
    %cst_3 = arith.constant 1.000000e+00 : f32
    %11 = vector.broadcast %cst_3 : f32 to vector<1x2048xf32>
    %12 = arith.addf %11, %10 : vector<1x2048xf32>
    %13 = arith.divf %0, %12 : vector<1x2048xf32>
    %c0_4 = arith.constant 0 : index
    %c0_5 = arith.constant 0 : index
    %14 = vector.load %arg2[%c0_4, %c0_5] : memref<1x2048xf32, #tpu.memory_space<vmem>>, vector<1x2048xf32>
    tpu.vector_store %arg2[%c0_4, %c0_5], %13 {strides = array<i32>} : memref<1x2048xf32, #tpu.memory_space<vmem>>, vector<1x2048xf32>,
    return
  }
  func.func @transform_0(%arg0: i32) -> (i32, i32) {
    %c0_i32 = arith.constant 0 : i32
    %c0_i32_0 = arith.constant 0 : i32
    return %arg0, %c0_i32 : i32, i32
  }
  func.func @transform_1(%arg0: i32) -> (i32, i32) {
    %c0_i32 = arith.constant 0 : i32
    %c0_i32_0 = arith.constant 0 : i32
    return %arg0, %c0_i32 : i32, i32
  }
}

</mosaic_0001>

<llo_original>
// kernel: tpu_custom_call.1
$region0: #{tpu_custom_call.1}
  #allocation0 [shape = 'u32[]', space=smem, size = 0x4, offset = 0x4, fixed_abs, tag = 'smem constant byte address 0x4 - core index']
  #allocation1 [shape = 'u32[144,128]{1,0:T(1,128)}', space=vmem, size = 0x12000, scoped, tag = 'internal scratch']
  %s0 = inlined_call_operand.hbm [shape: f32[1,2048], index: 0, kind: input, shape index: {}]
  %s1 = inlined_call_operand.hbm [shape: f32[1,2048], index: 1, kind: output, shape index: {}]
  %s2 = sld [smem:[#allocation0]]
  $region18: #{tpu_custom_call.1} parent=0
    _
  %s4 = ssub.s32 1, %s2
  %s5 = scalar_select 0, %s4, %s2
  $region1: #{tpu_custom_call.1} parent=0
    #allocation2 [shape = 'u8[8192]{0}', space=vmem, size = 0x2000, scoped, tag = 'input window, operand 0, single buffered']
    #allocation3 [shape = 's32[1]{0}', space=sflag, size = 0x4, scoped, tag = 'scoped memory for tpu_custom_call.1']
    #allocation4 [shape = 's32[1]{0}', space=sflag, size = 0x4, scoped, tag = 'scoped memory for tpu_custom_call.1']
    #allocation5 [shape = 'u8[8192]{0}', space=vmem, size = 0x2000, scoped, tag = 'output window, operand 0, single buffered']
    %6 = vsyncpa [#allocation3], 0
    %7 = vsyncpa [#allocation4], 0
    // Predicated region
    $region2: #{tpu_custom_call.1} parent=1 // pred_check
      _
    $region3: #{tpu_custom_call.1} parent=1 // pred_check_branch
      %9 = sbr.rel (0) target = $region5
    $region4: #{tpu_custom_call.1} parent=1 // pred_region
      %s11 = ssub.s32 256, 256
      %12 = vsyncadd [#allocation3], %s11
      %s14 = sshll.u32 [#allocation2], 4
      %s15 = int_to_ptr.vmem [resolvable:$true] %s14
      %17 = dma.hbm_to_vmem [thread:$0]  %s0, 256, %s15, [#allocation3]
    $region5: #{tpu_custom_call.1} parent=1 // pred_fallthru
      _
    // Predicated region
    $region6: #{tpu_custom_call.1} parent=1 // pred_check
      _
    $region7: #{tpu_custom_call.1} parent=1 // pred_check_branch
      %19 = sbr.rel (0) target = $region9
    $region8: #{tpu_custom_call.1} parent=1 // pred_region
      %20 = dma.done [#allocation3], 256
    $region9: #{tpu_custom_call.1} parent=1 // pred_fallthru
      _
    %v21 = vld [vmem:[#allocation2] sm:$0xff]
    %v22 = vld [vmem:[#allocation2 + $0x8] sm:$0xff]
    %v23 = vsub.f32 0.0, %v21
    %v24 = vsub.f32 0.0, %v22
    %v25 = vmul.f32 %v23, 1.442695
    %v26 = vpow.pop %v25
    %v27 = vmul.f32 %v24, 1.442695
    %v28 = vpow.pop %v27
    %v29 = vsub.f32 0.0, %v26
    %v30 = vsub.f32 0.0, %v28
    %v31 = vmul.f32 %v29, 1.442695
    %v32 = vpow.pop %v31
    %v33 = vmul.f32 %v30, 1.442695
    %v34 = vpow.pop %v33
    %v35 = vsub.f32 2.0, %v32
    %v36 = vsub.f32 2.0, %v34
    %v37 = vlog2.pop %v35
    %v38 = vmul.f32 %v37, 0.6931472
    %v39 = vlog2.pop %v36
    %v40 = vmul.f32 %v39, 0.6931472
    %v41 = vmul.f32 %v26, %v38
    %v42 = vmul.f32 %v28, %v40
    %v43 = vadd.f32 %v41, 1.0
    %v44 = vadd.f32 %v42, 1.0
    %v45 = vrcp.pop %v43
    %v46 = vmul.f32 %v21, %v45
    %v47 = vrcp.pop %v44
    %v48 = vmul.f32 %v22, %v47
    %49 = vst [vmem:[#allocation5] sm:$0xff] %v46
    %50 = vst [vmem:[#allocation5 + $0x8] sm:$0xff] %v48
    // Predicated region
    $region10: #{tpu_custom_call.1} parent=1 // pred_check
      _
    $region11: #{tpu_custom_call.1} parent=1 // pred_check_branch
      %52 = sbr.rel (0) target = $region13
    $region12: #{tpu_custom_call.1} parent=1 // pred_region
      %s54 = ssub.s32 256, 256
      %55 = vsyncadd [#allocation4], %s54
      %s57 = sshll.u32 [#allocation5], 4
      %s58 = int_to_ptr.vmem [resolvable:$true] %s57
      %60 = dma.vmem_to_hbm [thread:$0]  %s58, 256, %s1, [#allocation4]
    $region13: #{tpu_custom_call.1} parent=1 // pred_fallthru
      _
    // Predicated region
    $region14: #{tpu_custom_call.1} parent=1 // pred_check
      _
    $region15: #{tpu_custom_call.1} parent=1 // pred_check_branch
      %62 = sbr.rel (0) target = $region17
    $region16: #{tpu_custom_call.1} parent=1 // pred_region
      %63 = dma.done [#allocation4], 256
    $region17: #{tpu_custom_call.1} parent=1 // pred_fallthru
      _
    %64 = vsyncpa [#allocation3], 1
    %65 = vsyncpa [#allocation4], 1

</llo_original>
